<compile_context>
chip_gen: v7x
topology: tpu7x:2x2x1
jax: 0.10.0
libtpu: 0.0.40
codegen_flags: <defaults>
</compile_context>

<pallas_src>
import functools

import jax
import jax.numpy as jnp
from jax import lax
from jax.experimental import pallas as pl
from jax.experimental.pallas import tpu as pltpu


def _round_up(x, m):
    return ((x + m - 1) // m) * m


def _cdiv(a, b):
    return -(-a // b)


def _apply_activation(h, act_type):
    # h is a float32 tile.
    if act_type == "sigmoid":
        # exact reciprocal (approx=True drifts ~1e-3 from torch.sigmoid)
        return pl.reciprocal(1.0 + jnp.exp(-h), approx=False)
    elif act_type == "MeanAct":
        return jnp.clip(jnp.exp(h), 1e-05, 1e6)
    elif act_type == "DispAct":
        # numerically stable softplus: log(1 + exp(x)) = logaddexp(x, 0)
        return jnp.clip(jnp.logaddexp(h, 0.0), 1e-04, 1e4)
    return h


def _maybe_cast_bf16(x, w, use_bf16):
    if use_bf16:
        return x.astype(jnp.bfloat16), w.astype(jnp.bfloat16)
    return x, w


def _mask_k_tail(x, w, k_rem, tk):
    """Zero the out-of-bounds K columns/rows of the last-K edge block."""
    if k_rem == 0:
        return x, w
    k = pl.program_id(2)
    limit = jnp.where(k == pl.num_programs(2) - 1, k_rem, tk)
    col = lax.broadcasted_iota(jnp.int32, x.shape, 1)
    row = lax.broadcasted_iota(jnp.int32, w.shape, 0)
    # Mask BOTH operands: OOB garbage may be NaN/Inf and 0 * NaN == NaN.
    return jnp.where(col < limit, x, 0.0), jnp.where(row < limit, w, 0.0)


def _single_step_kernel(x_ref, w_ref, o_ref, *, act_type, use_bf16):
    # K fits in one block (tk == K): no accumulator, no zero-init, no '+='.
    x, w = _maybe_cast_bf16(x_ref[...], w_ref[...], use_bf16)
    h = jnp.dot(x, w, preferred_element_type=jnp.float32)
    o_ref[...] = _apply_activation(h, act_type).astype(o_ref.dtype)


def _multi_step_inplace_kernel(x_ref, w_ref, o_ref, *, act_type, k_rem, tk,
                               use_bf16):
    # f32 output: accumulate directly into the resident output block.
    k = pl.program_id(2)

    @pl.when(k == 0)
    def _():
        o_ref[...] = jnp.zeros_like(o_ref)

    x, w = _mask_k_tail(x_ref[...], w_ref[...], k_rem, tk)
    x, w = _maybe_cast_bf16(x, w, use_bf16)
    o_ref[...] += jnp.dot(x, w, preferred_element_type=jnp.float32)

    @pl.when(k == pl.num_programs(2) - 1)
    def _():
        o_ref[...] = _apply_activation(o_ref[...], act_type)


def _multi_step_scratch_kernel(x_ref, w_ref, o_ref, acc_ref, *, act_type,
                               k_rem, tk, use_bf16):
    # non-f32 output: keep an f32 VMEM accumulator, cast in the epilogue.
    k = pl.program_id(2)

    @pl.when(k == 0)
    def _():
        acc_ref[...] = jnp.zeros_like(acc_ref)

    x, w = _mask_k_tail(x_ref[...], w_ref[...], k_rem, tk)
    x, w = _maybe_cast_bf16(x, w, use_bf16)
    acc_ref[...] += jnp.dot(x, w, preferred_element_type=jnp.float32)

    @pl.when(k == pl.num_programs(2) - 1)
    def _():
        o_ref[...] = _apply_activation(acc_ref[...], act_type).astype(o_ref.dtype)


def layer_zinb_forward(x, w, act_type, *, tm=None, tn=None, tk=None,
                       use_bf16=False):
    """Pallas implementation of layer_zinb.forward(input, type)."""
    M, K = x.shape
    Kw, N = w.shape
    assert K == Kw, f"shape mismatch: {x.shape} @ {w.shape}"
    out_dtype = jnp.dtype(x.dtype)

    # VMEM-aware tile caps (v5e/v6e: 128 MiB physical, v7x: 64 MiB).
    try:
        vmem_cap = int(pltpu.get_tpu_info().vmem_capacity_bytes)
    except Exception:
        vmem_cap = 64 * 1024 * 1024  # conservative (v7x) fallback
    big_vmem = vmem_cap >= 96 * 1024 * 1024

    sub = 16 if use_bf16 else 8           # sublane multiple for the M tile
    tn_cap = 1024
    tk_cap = 2048 if big_vmem else 1024

    auto_tm, auto_tn = tm is None, tn is None
    if tm is None:
        tm = min(_round_up(M, sub), 256)
    if tn is None:
        tn = min(_round_up(N, 128), tn_cap)
    if tk is None:
        tk = tk_cap
    # No K padding: a block dim equal to the full array dim is always legal,
    # so a single K step uses tk == K exactly; otherwise mask the tail.
    if tk >= K:
        tk = K
    nk = _cdiv(K, tk)
    k_rem = K % tk

    gi, gj = _cdiv(M, tm), _cdiv(N, tn)
    # v7x megacore: keep at least one 'parallel' axis >= 2 so both TCs work.
    if gi == 1 and gj == 1:
        if auto_tn and N > 128:
            tn = _round_up(_cdiv(N, 2), 128)
        elif auto_tm and M > sub:
            tm = _round_up(_cdiv(M, 2), sub)
        gi, gj = _cdiv(M, tm), _cdiv(N, tn)

    use_scratch = nk > 1 and out_dtype != jnp.dtype(jnp.float32)

    x_b, w_b, o_b = x.dtype.itemsize, w.dtype.itemsize, out_dtype.itemsize
    need = (2 * tm * tk * x_b + 2 * tk * tn * w_b + 2 * tm * tn * o_b
            + (tm * tn * 4 if use_scratch else 0))
    vmem_limit = int(min(max(2 * need, 32 * 1024 * 1024),
                         vmem_cap - 8 * 1024 * 1024))

    trans = {"sigmoid": 1, "MeanAct": 1, "DispAct": 2}.get(act_type, 0)
    cost = pl.CostEstimate(
        flops=2 * M * N * K,
        transcendentals=M * N * trans,
        # x is re-streamed once per N tile, w once per M tile.
        bytes_accessed=int(M * K * x_b * gj + K * N * w_b * gi + M * N * o_b),
    )

    if nk == 1:
        kernel = functools.partial(_single_step_kernel, act_type=act_type,
                                   use_bf16=use_bf16)
        scratch = ()
    elif not use_scratch:
        kernel = functools.partial(_multi_step_inplace_kernel, act_type=act_type,
                                   k_rem=k_rem, tk=tk, use_bf16=use_bf16)
        scratch = ()
    else:
        kernel = functools.partial(_multi_step_scratch_kernel, act_type=act_type,
                                   k_rem=k_rem, tk=tk, use_bf16=use_bf16)
        scratch = (pltpu.VMEM((tm, tn), jnp.float32),)

    return pl.pallas_call(
        kernel,
        out_shape=jax.ShapeDtypeStruct((M, N), out_dtype),
        grid_spec=pltpu.PrefetchScalarGridSpec(
            num_scalar_prefetch=0,
            grid=(gi, gj, nk),
            in_specs=[
                pl.BlockSpec((tm, tk), lambda i, j, k: (i, k)),
                pl.BlockSpec((tk, tn), lambda i, j, k: (k, j)),
            ],
            out_specs=pl.BlockSpec((tm, tn), lambda i, j, k: (i, j)),
            scratch_shapes=scratch,
        ),
        compiler_params=pltpu.CompilerParams(
            dimension_semantics=("parallel", "parallel", "arbitrary"),
            vmem_limit_bytes=vmem_limit,
        ),
        cost_estimate=cost,
    )(x, w)


def xavier_uniform(key, in_feature, out_feature, gain=1.0, dtype=jnp.float32):
    # matches torch.nn.init.xavier_uniform_ for an (in_feature, out_feature) matrix
    bound = gain * jnp.sqrt(6.0 / (in_feature + out_feature))
    return jax.random.uniform(
        key, (in_feature, out_feature), dtype=dtype, minval=-bound, maxval=bound
    )


def reference_forward(x, w, act_type):
    h = x @ w
    if act_type == "sigmoid":
        return jax.nn.sigmoid(h)
    elif act_type == "MeanAct":
        return jnp.clip(jnp.exp(h), 1e-05, 1e6)
    elif act_type == "DispAct":
        return jnp.clip(jax.nn.softplus(h), 1e-04, 1e4)
    return h


if __name__ == "__main__":
    key = jax.random.PRNGKey(0)
    k_x, k_w, k_x2, k_w2 = jax.random.split(key, 4)

    ok = True

    # Case 1: small NON-aligned shapes -> single-k-step kernel, cdiv edge
    # blocks on M/N (no wrapper padding), megacore tn split.
    M, in_feature, out_feature = 12, 200, 160
    x = jax.random.normal(k_x, (M, in_feature), dtype=jnp.float32)
    w = xavier_uniform(k_w, in_feature, out_feature)
    for act_type in ("sigmoid", "MeanAct", "DispAct", "none"):
        out = jax.block_until_ready(layer_zinb_forward(x, w, act_type))
        ref = reference_forward(x, w, act_type)
        if out.shape != ref.shape or not jnp.allclose(out, ref, atol=2e-3, rtol=2e-3):
            ok = False
            print(f"MISMATCH case1 act_type={act_type}")

    # Case 2: multi-k-step with a non-divisible K tail -> in-kernel K masking
    # and in-place f32 accumulation in the output block.
    M2, K2, N2 = 16, 300, 256
    x2 = jax.random.normal(k_x2, (M2, K2), dtype=jnp.float32)
    w2 = xavier_uniform(k_w2, K2, N2)
    for act_type in ("sigmoid", "MeanAct", "DispAct"):
        out = jax.block_until_ready(
            layer_zinb_forward(x2, w2, act_type, tm=8, tn=128, tk=128)
        )
        ref = reference_forward(x2, w2, act_type)
        if not jnp.allclose(out, ref, atol=2e-3, rtol=2e-3):
            ok = False
            print(f"MISMATCH case2 act_type={act_type}")

    # Case 3: bf16 MXU path smoke test (looser numerics by design; just check
    # it compiles, runs, and the sigmoid output is finite / well-shaped).
    out_bf = jax.block_until_ready(
        layer_zinb_forward(x2, w2, "sigmoid", use_bf16=True)
    )
    if out_bf.shape != (M2, N2) or not bool(jnp.all(jnp.isfinite(out_bf))):
        ok = False
        print("MISMATCH case3 bf16 smoke test")

    if ok:
        print("KERNEL_OK")
</pallas_src>

<mosaic_0001>
module attributes {stable_mosaic.version = 11 : i64} {
  func.func @_single_step_kernel(%arg0: i32, %arg1: i32, %arg2: i32, %arg3: memref<16x200xf32, #tpu.memory_space<vmem>>, %arg4: memref<200x128xf32, #tpu.memory_space<vmem>>, %arg5: memref<16x128xf32, #tpu.memory_space<vmem>>) attributes {dimension_semantics = [#tpu.dimension_semantics<parallel>, #tpu.dimension_semantics<parallel>, #tpu.dimension_semantics<arbitrary>], iteration_bounds = array<i64: 1, 2, 1>, scalar_prefetch = 0 : i64, scratch_operands = 0 : i64, tpu.core_type = #tpu.core_type<tc>, window_params = [{transform_indices = @transform_0, window_bounds = array<i64: 16, 200>}, {transform_indices = @transform_1, window_bounds = array<i64: 200, 128>}, {transform_indices = @transform_2, window_bounds = array<i64: 16, 128>}]} {
    %c0 = arith.constant 0 : index
    %c0_0 = arith.constant 0 : index
    %0 = vector.load %arg3[%c0, %c0_0] : memref<16x200xf32, #tpu.memory_space<vmem>>, vector<16x200xf32>
    %c0_1 = arith.constant 0 : index
    %c0_2 = arith.constant 0 : index
    %1 = vector.load %arg4[%c0_1, %c0_2] : memref<200x128xf32, #tpu.memory_space<vmem>>, vector<200x128xf32>
    %cst = arith.constant dense<0.000000e+00> : vector<16x128xf32>
    %2 = tpu.matmul %0, %1, %cst {dimension_numbers = #tpu.dot_dimension_numbers<[1], [0], [0], [1], [0, 0, 1, 1], [], []>} : vector<16x200xf32>, vector<200x128xf32>, vector<16x128xf32> -> vector<16x128xf32>
    %cst_3 = arith.constant 0.000000e+00 : f32
    %3 = vector.broadcast %cst_3 : f32 to vector<16x128xf32>
    %4 = arith.subf %3, %2 : vector<16x128xf32>
    %5 = math.exp %4 : vector<16x128xf32>
    %cst_4 = arith.constant 1.000000e+00 : f32
    %6 = vector.broadcast %cst_4 : f32 to vector<16x128xf32>
    %7 = arith.addf %6, %5 : vector<16x128xf32>
    %8 = tpu.reciprocal %7 : vector<16x128xf32> -> vector<16x128xf32>
    %c0_5 = arith.constant 0 : index
    %c0_6 = arith.constant 0 : index
    %9 = vector.load %arg5[%c0_5, %c0_6] : memref<16x128xf32, #tpu.memory_space<vmem>>, vector<16x128xf32>
    tpu.vector_store %arg5[%c0_5, %c0_6], %8 {strides = array<i32>} : memref<16x128xf32, #tpu.memory_space<vmem>>, vector<16x128xf32>,
    return
  }
  func.func @transform_0(%arg0: i32, %arg1: i32, %arg2: i32) -> (i32, i32) {
    %c0_i32 = arith.constant 0 : i32
    return %arg0, %arg2 : i32, i32
  }
  func.func @transform_1(%arg0: i32, %arg1: i32, %arg2: i32) -> (i32, i32) {
    %c0_i32 = arith.constant 0 : i32
    return %arg2, %arg1 : i32, i32
  }
  func.func @transform_2(%arg0: i32, %arg1: i32, %arg2: i32) -> (i32, i32) {
    %c0_i32 = arith.constant 0 : i32
    return %arg0, %arg1 : i32, i32
  }
}

</mosaic_0001>

<llo_original>
// kernel: tpu_custom_call.1
$region0: #{tpu_custom_call.1}
  #allocation0 [shape = 'u32[]', space=smem, size = 0x4, offset = 0x4, fixed_abs, tag = 'smem constant byte address 0x4 - core index']
  #allocation1 [shape = 'u32[144,128]{1,0:T(1,128)}', space=vmem, size = 0x12000, scoped, tag = 'internal scratch']
  %s0 = inlined_call_operand.vmem [shape: f32[12,200], index: 0, kind: input, shape index: {}]
  %s1 = inlined_call_operand.vmem [shape: f32[200,160], index: 1, kind: input, shape index: {}]
  %s2 = inlined_call_operand.hbm [shape: f32[12,160], index: 2, kind: output, shape index: {}]
  %s3 = sld [smem:[#allocation0]]
  $region79: #{tpu_custom_call.1} parent=0
    _
  %s5 = ssub.s32 1, %s3
  %s6 = scalar_select 0, %s5, %s3
  $region1: #{tpu_custom_call.1} parent=0
    #allocation2 [shape = 'u8[204800]{0}', space=vmem, size = 0x32000, scoped, tag = 'input window, operand 1']
    #allocation3 [shape = 'u8[16384]{0}', space=vmem, size = 0x4000, scoped, tag = 'output window, operand 0']
    #allocation4 [shape = 's32[2]{0}', space=sflag, size = 0x8, scoped, tag = 'scoped memory for tpu_custom_call.1']
    %7 = vsyncpa [#allocation4], 0
    %s8 = scalar_lea.sflag [#allocation4], 1
    %9 = vsyncpa %s8, 0
    loop: start=0, step=1, limit=4
    $region2: #{tpu_custom_call.1} parent=1 // loop_pre_header
      _
    $region3: #{tpu_custom_call.1} parent=1 // loop_header
      %s11 = sphi 0, %s15
      %p12 = scmp.ge.s32.totalorder %s11, 4
      %s18 = sphi 0, %s37
      %s19 = sphi 0, %s33
      %s20 = sphi 0, %s29
      %s21 = sphi 0, %s18
      %s22 = sphi 0, %s19
      %s23 = sphi 0, %s20
      %s24 = sphi 0, %s21
      %s25 = sphi 0, %s22
      %s26 = sphi 0, %s23
      %s42 = sphi 0, %s44
      %s45 = sphi 0, %s42
      %s46 = sphi 0, %s45
      %s62 = sphi 0, %s46
      %s70 = sphi 0, %s72
      %s73 = sphi 0, %s70
      %s74 = sphi 0, %s73
      %s90 = sphi 0, %s74
      %s98 = sphi 0, %s100
      %s101 = sphi 0, %s98
      %s102 = sphi 0, %s101
      %s118 = sphi 0, %s102
    $region4: #{tpu_custom_call.1} parent=1 // loop_header_branch
      %14 = sbr.rel (%p12) target = $region8
    $region5: #{tpu_custom_call.1} parent=1 // loop_body
      %s16 = ssub.s32 %s11, 1
      %s17 = ssub.s32 %s11, 2
      %s27 = sadd.s32 1, %s20
      %p28 = scmp.ge.s32.totalorder %s27, 1
      %s29 = scalar_select %p28, 0, %s27
      %s30 = sadd.s32 1, %s19
      %s31 = scalar_select %p28, %s30, %s19
      %p32 = scmp.ge.s32.totalorder %s31, 2
      %s33 = scalar_select %p32, 0, %s31
      %s34 = sadd.s32 1, %s18
      %s35 = scalar_select %p32, %s34, %s18
      %p36 = scmp.ge.s32.totalorder %s35, 1
      %s37 = scalar_select %p36, 0, %s35
      %s38 = ssub.s32 %s18, %s37
      %s39 = ssub.s32 %s20, %s29
      %s40 = sor.u32 %s38, %s39
      %p41 = scmp.eq.s32.totalorder %s40, 0
      %s43 = sadd.s32 %s42, 1
      %s44 = scalar_select %p41, %s42, %s43
      %p47 = pneg %p41
      %p48 = scmp.eq.s32.totalorder %s11, 1
      %p49 = por %p47, %p48
      %p50 = scmp.ne.s32.totalorder %s42, %s45
      %p51 = scmp.eq.s32.totalorder %s11, 0
      %p52 = por %p50, %p51
      %p53 = scmp.ne.s32.totalorder %s42, %s45
      %p54 = scmp.eq.s32.totalorder %s16, 1
      %p55 = por %p53, %p54
      %p56 = scmp.ne.s32.totalorder %s45, %s46
      %p57 = scmp.eq.s32.totalorder %s16, 0
      %p58 = por %p56, %p57
      %p59 = scmp.ne.s32.totalorder %s45, %s46
      %p60 = scmp.eq.s32.totalorder %s17, 1
      %p61 = por %p59, %p60
      %p63 = scmp.ne.s32.totalorder %s46, %s62
      %p64 = scmp.eq.s32.totalorder %s17, 0
      %p65 = por %p63, %p64
      %s66 = ssub.s32 %s20, %s29
      %s67 = ssub.s32 %s19, %s33
      %s68 = sor.u32 %s66, %s67
      %p69 = scmp.eq.s32.totalorder %s68, 0
      %s71 = sadd.s32 %s70, 1
      %s72 = scalar_select %p69, %s70, %s71
      %p75 = pneg %p69
      %p76 = scmp.eq.s32.totalorder %s11, 1
      %p77 = por %p75, %p76
      %p78 = scmp.ne.s32.totalorder %s70, %s73
      %p79 = scmp.eq.s32.totalorder %s11, 0
      %p80 = por %p78, %p79
      %p81 = scmp.ne.s32.totalorder %s70, %s73
      %p82 = scmp.eq.s32.totalorder %s16, 1
      %p83 = por %p81, %p82
      %p84 = scmp.ne.s32.totalorder %s73, %s74
      %p85 = scmp.eq.s32.totalorder %s16, 0
      %p86 = por %p84, %p85
      %p87 = scmp.ne.s32.totalorder %s73, %s74
      %p88 = scmp.eq.s32.totalorder %s17, 1
      %p89 = por %p87, %p88
      %p91 = scmp.ne.s32.totalorder %s74, %s90
      %p92 = scmp.eq.s32.totalorder %s17, 0
      %p93 = por %p91, %p92
      %s94 = ssub.s32 %s18, %s37
      %s95 = ssub.s32 %s19, %s33
      %s96 = sor.u32 %s94, %s95
      %p97 = scmp.eq.s32.totalorder %s96, 0
      %s99 = sadd.s32 %s98, 1
      %s100 = scalar_select %p97, %s98, %s99
      %p103 = pneg %p97
      %p104 = scmp.eq.s32.totalorder %s11, 1
      %p105 = por %p103, %p104
      %p106 = scmp.ne.s32.totalorder %s98, %s101
      %p107 = scmp.eq.s32.totalorder %s11, 0
      %p108 = por %p106, %p107
      %p109 = scmp.ne.s32.totalorder %s98, %s101
      %p110 = scmp.eq.s32.totalorder %s16, 1
      %p111 = por %p109, %p110
      %p112 = scmp.ne.s32.totalorder %s101, %s102
      %p113 = scmp.eq.s32.totalorder %s16, 0
      %p114 = por %p112, %p113
      %p115 = scmp.ne.s32.totalorder %s101, %s102
      %p116 = scmp.eq.s32.totalorder %s17, 1
      %p117 = por %p115, %p116
      %p119 = scmp.ne.s32.totalorder %s102, %s118
      %p120 = scmp.eq.s32.totalorder %s17, 0
      %p121 = por %p119, %p120
      %p122 = scmp.le.s32.totalorder 1, %s11
      %p123 = scmp.lt.s32.totalorder %s11, 3
      %p124 = pnand %p122, %p123
      %p125 = pneg %p124
      // Predicated region
      $region9: #{tpu_custom_call.1} parent=5 // pred_check
        _
      $region10: #{tpu_custom_call.1} parent=5 // pred_check_branch
        %127 = sbr.rel (%p124) target = $region12
      $region11: #{tpu_custom_call.1} parent=5 // pred_region
        %s128 = ssub.s32 %s11, 1
        // Predicated region
        $region13: #{tpu_custom_call.1} parent=11 // pred_check
          %p129 = pneg %p58
        $region14: #{tpu_custom_call.1} parent=11 // pred_check_branch
          %131 = sbr.rel (%p129) target = $region16
        $region15: #{tpu_custom_call.1} parent=11 // pred_region
          %s132 = smul.u32 2, %s21
          %s133 = smul.u32 2, %s23
          %p134 = scmp.lt.s32.totalorder %s132, 1
          %s135 = scalar_select %p134, %s132, 1
          %p136 = scmp.lt.s32.totalorder %s133, 1
          %s137 = scalar_select %p136, %s133, 1
          %s138 = smul.addr %s135, 2
          %s139 = sadd.s32 %s137, %s138
          %s140 = smul.addr %s139, 8
          %s141 = scalar_lea.vmem %s0, %s140
          %s142 = smul.u32 2, %s21
          %s143 = smul.u32 2, %s23
        $region16: #{tpu_custom_call.1} parent=11 // pred_fallthru
          _
      $region12: #{tpu_custom_call.1} parent=5 // pred_fallthru
        _
      %p144 = scmp.lt.s32.totalorder %s11, 2
      // Predicated region
      $region17: #{tpu_custom_call.1} parent=5 // pred_check
        %p145 = pneg %p144
      $region18: #{tpu_custom_call.1} parent=5 // pred_check_branch
        %147 = sbr.rel (%p145) target = $region20
      $region19: #{tpu_custom_call.1} parent=5 // pred_region
        // Predicated region
        $region21: #{tpu_custom_call.1} parent=19 // pred_check
          %p148 = pneg %p80
        $region22: #{tpu_custom_call.1} parent=19 // pred_check_branch
          %150 = sbr.rel (%p148) target = $region24
        $region23: #{tpu_custom_call.1} parent=19 // pred_region
          %s151 = sand.u32 %s70, 1
          %s152 = sand.u32 %s70, 1
          %s153 = smul.addr %s152, 200
          %s154 = scalar_lea.vmem [#allocation2], %s153
          %s155 = smul.u32 25, %s20
          %s156 = smul.addr %s155, 2
          %s157 = sadd.s32 %s19, %s156
          %s158 = smul.addr %s157, 8
          %s159 = scalar_lea.vmem %s1, %s158
          // Predicated region
          $region25: #{tpu_custom_call.1} parent=23 // pred_check
            _
          $region26: #{tpu_custom_call.1} parent=23 // pred_check_branch
            %161 = sbr.rel (0) target = $region28
          $region27: #{tpu_custom_call.1} parent=23 // pred_region
            // Predicated region
            $region29: #{tpu_custom_call.1} parent=27 // pred_check
              _
            $region30: #{tpu_custom_call.1} parent=27 // pred_check_branch
              %163 = sbr.rel (0) target = $region32
            $region31: #{tpu_custom_call.1} parent=27 // pred_region
              // Predicated region
              $region44: #{tpu_custom_call.1} parent=31 // pred_check
                _
              $region45: #{tpu_custom_call.1} parent=31 // pred_check_branch
                %226 = sbr.rel (0) target = $region47
              $region46: #{tpu_custom_call.1} parent=31 // pred_region
                loop: start=0, step=1, limit=1
                $region48: #{tpu_custom_call.1} parent=46 // loop_pre_header
                  _
                $region49: #{tpu_custom_call.1} parent=46 // loop_header
                  %s228 = sphi 0, %s232
                  %p229 = scmp.ge.s32.totalorder %s228, 1
                  %s233 = sphi %s159, %s159
                  %s234 = sphi %s154, %s154
                $region50: #{tpu_custom_call.1} parent=46 // loop_header_branch
                  %231 = sbr.rel (%p229) target = $region54
                $region51: #{tpu_custom_call.1} parent=46 // loop_body
                  %v235 = vld [vmem:[%s233] sm:$0xff]
                  %236 = vst [vmem:[%s234] sm:$0xff] %v235
                  %v237 = vld [vmem:[%s233 + $0x10] sm:$0xff]
                  %238 = vst [vmem:[%s234 + $0x8] sm:$0xff] %v237
                  %v239 = vld [vmem:[%s233 + $0x20] sm:$0xff]
                  %240 = vst [vmem:[%s234 + $0x10] sm:$0xff] %v239
                  %v241 = vld [vmem:[%s233 + $0x30] sm:$0xff]
                  %242 = vst [vmem:[%s234 + $0x18] sm:$0xff] %v241
                  %v243 = vld [vmem:[%s233 + $0x40] sm:$0xff]
                  %244 = vst [vmem:[%s234 + $0x20] sm:$0xff] %v243
                  %v245 = vld [vmem:[%s233 + $0x50] sm:$0xff]
                  %246 = vst [vmem:[%s234 + $0x28] sm:$0xff] %v245
                  %v247 = vld [vmem:[%s233 + $0x60] sm:$0xff]
                  %248 = vst [vmem:[%s234 + $0x30] sm:$0xff] %v247
                  %v249 = vld [vmem:[%s233 + $0x70] sm:$0xff]
                  %250 = vst [vmem:[%s234 + $0x38] sm:$0xff] %v249
                  %v251 = vld [vmem:[%s233 + $0x80] sm:$0xff]
                  %252 = vst [vmem:[%s234 + $0x40] sm:$0xff] %v251
                  %v253 = vld [vmem:[%s233 + $0x90] sm:$0xff]
                  %254 = vst [vmem:[%s234 + $0x48] sm:$0xff] %v253
                  %v255 = vld [vmem:[%s233 + $0xa0] sm:$0xff]
                  %256 = vst [vmem:[%s234 + $0x50] sm:$0xff] %v255
                  %v257 = vld [vmem:[%s233 + $0xb0] sm:$0xff]
                  %258 = vst [vmem:[%s234 + $0x58] sm:$0xff] %v257
                  %v259 = vld [vmem:[%s233 + $0xc0] sm:$0xff]
                  %260 = vst [vmem:[%s234 + $0x60] sm:$0xff] %v259
                  %v261 = vld [vmem:[%s233 + $0xd0] sm:$0xff]
                  %262 = vst [vmem:[%s234 + $0x68] sm:$0xff] %v261
                  %v263 = vld [vmem:[%s233 + $0xe0] sm:$0xff]
                  %264 = vst [vmem:[%s234 + $0x70] sm:$0xff] %v263
                  %v265 = vld [vmem:[%s233 + $0xf0] sm:$0xff]
                  %266 = vst [vmem:[%s234 + $0x78] sm:$0xff] %v265
                  %v267 = vld [vmem:[%s233 + $0x100] sm:$0xff]
                  %268 = vst [vmem:[%s234 + $0x80] sm:$0xff] %v267
                  %v269 = vld [vmem:[%s233 + $0x110] sm:$0xff]
                  %270 = vst [vmem:[%s234 + $0x88] sm:$0xff] %v269
                  %v271 = vld [vmem:[%s233 + $0x120] sm:$0xff]
                  %272 = vst [vmem:[%s234 + $0x90] sm:$0xff] %v271
                  %v273 = vld [vmem:[%s233 + $0x130] sm:$0xff]
                  %274 = vst [vmem:[%s234 + $0x98] sm:$0xff] %v273
                  %v275 = vld [vmem:[%s233 + $0x140] sm:$0xff]
                  %276 = vst [vmem:[%s234 + $0xa0] sm:$0xff] %v275
                  %v277 = vld [vmem:[%s233 + $0x150] sm:$0xff]
                  %278 = vst [vmem:[%s234 + $0xa8] sm:$0xff] %v277
                  %v279 = vld [vmem:[%s233 + $0x160] sm:$0xff]
                  %280 = vst [vmem:[%s234 + $0xb0] sm:$0xff] %v279
                  %v281 = vld [vmem:[%s233 + $0x170] sm:$0xff]
                  %282 = vst [vmem:[%s234 + $0xb8] sm:$0xff] %v281
                  %v283 = vld [vmem:[%s233 + $0x180] sm:$0xff]
                  %284 = vst [vmem:[%s234 + $0xc0] sm:$0xff] %v283
                $region52: #{tpu_custom_call.1} parent=46 // loop_footer
                  %s232 = sadd.s32 1, %s228
                $region53: #{tpu_custom_call.1} parent=46 // loop_footer_branch
                  %227 = sbr.rel target = $region49
                $region54: #{tpu_custom_call.1} parent=46 // loop_exit
                  _
              $region47: #{tpu_custom_call.1} parent=31 // pred_fallthru
                _
              // Predicated region
              $region55: #{tpu_custom_call.1} parent=31 // pred_check
                _
              $region56: #{tpu_custom_call.1} parent=31 // pred_check_branch
                %286 = sbr.rel target = $region58
              $region57: #{tpu_custom_call.1} parent=31 // pred_region
                _
              $region58: #{tpu_custom_call.1} parent=31 // pred_fallthru
                _
            $region32: #{tpu_custom_call.1} parent=27 // pred_fallthru
              _
            // Predicated region
            $region33: #{tpu_custom_call.1} parent=27 // pred_check
              _
            $region34: #{tpu_custom_call.1} parent=27 // pred_check_branch
              %165 = sbr.rel target = $region36
            $region35: #{tpu_custom_call.1} parent=27 // pred_region
              loop: start=0, step=1, limit=1
              $region37: #{tpu_custom_call.1} parent=35 // loop_pre_header
                _
              $region38: #{tpu_custom_call.1} parent=35 // loop_header
                %s168 = sphi 0, %s172
                %p169 = scmp.ge.s32.totalorder %s168, 1
                %s173 = sphi %s159, %s159
                %s174 = sphi %s154, %s154
              $region39: #{tpu_custom_call.1} parent=35 // loop_header_branch
                %171 = sbr.rel (%p169) target = $region43
              $region40: #{tpu_custom_call.1} parent=35 // loop_body
                %v175 = vld [vmem:[%s173] sm:$0xff]
                %176 = vst [vmem:[%s174] sm:$0xff] %v175
                %v177 = vld [vmem:[%s173 + $0x10] sm:$0xff]
                %178 = vst [vmem:[%s174 + $0x8] sm:$0xff] %v177
                %v179 = vld [vmem:[%s173 + $0x20] sm:$0xff]
                %180 = vst [vmem:[%s174 + $0x10] sm:$0xff] %v179
                %v181 = vld [vmem:[%s173 + $0x30] sm:$0xff]
                %182 = vst [vmem:[%s174 + $0x18] sm:$0xff] %v181
                %v183 = vld [vmem:[%s173 + $0x40] sm:$0xff]
                %184 = vst [vmem:[%s174 + $0x20] sm:$0xff] %v183
                %v185 = vld [vmem:[%s173 + $0x50] sm:$0xff]
                %186 = vst [vmem:[%s174 + $0x28] sm:$0xff] %v185
                %v187 = vld [vmem:[%s173 + $0x60] sm:$0xff]
                %188 = vst [vmem:[%s174 + $0x30] sm:$0xff] %v187
                %v189 = vld [vmem:[%s173 + $0x70] sm:$0xff]
                %190 = vst [vmem:[%s174 + $0x38] sm:$0xff] %v189
                %v191 = vld [vmem:[%s173 + $0x80] sm:$0xff]
                %192 = vst [vmem:[%s174 + $0x40] sm:$0xff] %v191
                %v193 = vld [vmem:[%s173 + $0x90] sm:$0xff]
                %194 = vst [vmem:[%s174 + $0x48] sm:$0xff] %v193
                %v195 = vld [vmem:[%s173 + $0xa0] sm:$0xff]
                %196 = vst [vmem:[%s174 + $0x50] sm:$0xff] %v195
                %v197 = vld [vmem:[%s173 + $0xb0] sm:$0xff]
                %198 = vst [vmem:[%s174 + $0x58] sm:$0xff] %v197
                %v199 = vld [vmem:[%s173 + $0xc0] sm:$0xff]
                %200 = vst [vmem:[%s174 + $0x60] sm:$0xff] %v199
                %v201 = vld [vmem:[%s173 + $0xd0] sm:$0xff]
                %202 = vst [vmem:[%s174 + $0x68] sm:$0xff] %v201
                %v203 = vld [vmem:[%s173 + $0xe0] sm:$0xff]
                %204 = vst [vmem:[%s174 + $0x70] sm:$0xff] %v203
                %v205 = vld [vmem:[%s173 + $0xf0] sm:$0xff]
                %206 = vst [vmem:[%s174 + $0x78] sm:$0xff] %v205
                %v207 = vld [vmem:[%s173 + $0x100] sm:$0xff]
                %208 = vst [vmem:[%s174 + $0x80] sm:$0xff] %v207
                %v209 = vld [vmem:[%s173 + $0x110] sm:$0xff]
                %210 = vst [vmem:[%s174 + $0x88] sm:$0xff] %v209
                %v211 = vld [vmem:[%s173 + $0x120] sm:$0xff]
                %212 = vst [vmem:[%s174 + $0x90] sm:$0xff] %v211
                %v213 = vld [vmem:[%s173 + $0x130] sm:$0xff]
                %214 = vst [vmem:[%s174 + $0x98] sm:$0xff] %v213
                %v215 = vld [vmem:[%s173 + $0x140] sm:$0xff]
                %216 = vst [vmem:[%s174 + $0xa0] sm:$0xff] %v215
                %v217 = vld [vmem:[%s173 + $0x150] sm:$0xff]
                %218 = vst [vmem:[%s174 + $0xa8] sm:$0xff] %v217
                %v219 = vld [vmem:[%s173 + $0x160] sm:$0xff]
                %220 = vst [vmem:[%s174 + $0xb0] sm:$0xff] %v219
                %v221 = vld [vmem:[%s173 + $0x170] sm:$0xff]
                %222 = vst [vmem:[%s174 + $0xb8] sm:$0xff] %v221
                %v223 = vld [vmem:[%s173 + $0x180] sm:$0xff]
                %224 = vst [vmem:[%s174 + $0xc0] sm:$0xff] %v223
              $region41: #{tpu_custom_call.1} parent=35 // loop_footer
                %s172 = sadd.s32 1, %s168
              $region42: #{tpu_custom_call.1} parent=35 // loop_footer_branch
                %167 = sbr.rel target = $region38
              $region43: #{tpu_custom_call.1} parent=35 // loop_exit
                _
            $region36: #{tpu_custom_call.1} parent=27 // pred_fallthru
              _
          $region28: #{tpu_custom_call.1} parent=23 // pred_fallthru
            _
          %287 = vnop
        $region24: #{tpu_custom_call.1} parent=19 // pred_fallthru
          _
      $region20: #{tpu_custom_call.1} parent=5 // pred_fallthru
        _
      %p288 = scmp.le.s32.totalorder 1, %s11
      %p289 = scmp.lt.s32.totalorder %s11, 3
      %p290 = pnand %p288, %p289
      %p291 = pneg %p290
      // Predicated region
      $region59: #{tpu_custom_call.1} parent=5 // pred_check
        _
      $region60: #{tpu_custom_call.1} parent=5 // pred_check_branch
        %293 = sbr.rel (%p290) target = $region62
      $region61: #{tpu_custom_call.1} parent=5 // pred_region
        %s294 = ssub.s32 %s11, 1
        %s295 = sand.u32 %s73, 1
        %s296 = sand.u32 %s73, 1
        %s297 = smul.addr %s296, 200
        %s298 = scalar_lea.vmem [#allocation2], %s297
        // Predicated region
        $region63: #{tpu_custom_call.1} parent=61 // pred_check
          %p299 = pneg %p86
        $region64: #{tpu_custom_call.1} parent=61 // pred_check_branch
          %301 = sbr.rel (%p299) target = $region66
        $region65: #{tpu_custom_call.1} parent=61 // pred_region
          _
        $region66: #{tpu_custom_call.1} parent=61 // pred_fallthru
          _
        %s302 = smul.u32 2, %s21
        %s303 = smul.u32 2, %s23
        %p304 = scmp.lt.s32.totalorder %s302, 1
        %s305 = scalar_select %p304, %s302, 1
        %p306 = scmp.lt.s32.totalorder %s303, 1
        %s307 = scalar_select %p306, %s303, 1
        %s308 = smul.addr %s305, 2
        %s309 = sadd.s32 %s307, %s308
        %s310 = smul.addr %s309, 8
        %s311 = scalar_lea.vmem %s0, %s310
        %p312 = pneg %p58
        %p313 = pneg %p55
        %s314 = sand.u32 %s73, 1
        %s315 = sand.u32 %s73, 1
        %s316 = smul.addr %s315, 200
        %s317 = scalar_lea.vmem [#allocation2], %s316
        %p318 = pneg %p86
        %p319 = pneg %p83
        %p320 = pneg %p114
        %p321 = pneg %p111
        %s322 = sand.u32 %s101, 1
        %s323 = scalar_lea.sflag [#allocation4], %s322
        %s324 = sand.u32 %s101, 1
        %s325 = smul.addr %s324, 16
        %s326 = scalar_lea.vmem [#allocation3], %s325
        %s327 = smul.u32 2, %s21
        %s328 = smul.u32 2, %s23
        %p329 = scmp.lt.s32.totalorder %s327, 1
        %s330 = scalar_select %p329, %s327, 1
        %p331 = scmp.lt.s32.totalorder %s328, 1
        %s332 = scalar_select %p331, %s328, 1
        %s333 = smul.addr %s330, 2
        %s334 = sadd.s32 %s332, %s333
        %s335 = smul.addr %s334, 8
        %s336 = scalar_lea.vmem %s0, %s335
        %s337 = smul.u32 2, %s21
        %s338 = smul.u32 2, %s23
        %s339 = smul.u32 25, %s23
        %s340 = smul.u32 2, %s21
        %v341 = vld [vmem:[%s336] sm:$0xff]
        %v342 = vld [vmem:[%s336 + $0x8] sm:$0xff]
        %v343 = vld [vmem:[%s336 + $0x10] sm:$0xff]
        %v344 = vld [vmem:[%s336 + $0x18] sm:$0xff]
        %v345 = vld [vmem:[%s298] sm:$0xff]
        %v346 = vld [vmem:[%s298 + $0x8] sm:$0xff]
        %v347 = vld [vmem:[%s298 + $0x10] sm:$0xff]
        %v348 = vld [vmem:[%s298 + $0x18] sm:$0xff]
        %v349 = vld [vmem:[%s298 + $0x20] sm:$0xff]
        %v350 = vld [vmem:[%s298 + $0x28] sm:$0xff]
        %v351 = vld [vmem:[%s298 + $0x30] sm:$0xff]
        %v352 = vld [vmem:[%s298 + $0x38] sm:$0xff]
        %v353 = vld [vmem:[%s298 + $0x40] sm:$0xff]
        %v354 = vld [vmem:[%s298 + $0x48] sm:$0xff]
        %v355 = vld [vmem:[%s298 + $0x50] sm:$0xff]
        %v356 = vld [vmem:[%s298 + $0x58] sm:$0xff]
        %v357 = vld [vmem:[%s298 + $0x60] sm:$0xff]
        %v358 = vld [vmem:[%s298 + $0x68] sm:$0xff]
        %v359 = vld [vmem:[%s298 + $0x70] sm:$0xff]
        %v360 = vld [vmem:[%s298 + $0x78] sm:$0xff]
        %v361 = vld [vmem:[%s298 + $0x80] sm:$0xff]
        %v362 = vld [vmem:[%s298 + $0x88] sm:$0xff]
        %v363 = vld [vmem:[%s298 + $0x90] sm:$0xff]
        %v364 = vld [vmem:[%s298 + $0x98] sm:$0xff]
        %v365 = vld [vmem:[%s298 + $0xa0] sm:$0xff]
        %v366 = vld [vmem:[%s298 + $0xa8] sm:$0xff]
        %v367 = vld [vmem:[%s298 + $0xb0] sm:$0xff]
        %v368 = vld [vmem:[%s298 + $0xb8] sm:$0xff]
        %v369 = vld [vmem:[%s298 + $0xc0] sm:$0xff]
        %vm370 = vcmask 588800
        %v372 = vsel %vm370, %v342, 0
        %v375 = vsel %vm370, %v344, 0
        %377 = vmatprep.subr.mxu0 0.0
        %378 = vmatpush1.msra.mxu0 %v345
        %379 = vmatprep.subr.mxu0 0.0
        %380 = vmatpush1.msra.mxu0 %v346
        %381 = vmatprep.subr.mxu0 0.0
        %382 = vmatpush1.msra.mxu0 %v347
        %383 = vmatprep.subr.mxu0 0.0
        %384 = vmatpush1.msra.mxu0 %v348
        %385 = vmatprep.subr.mxu0 0.0
        %386 = vmatpush1.msra.mxu0 %v349
        %387 = vmatprep.subr.mxu0 0.0
        %388 = vmatpush1.msra.mxu0 %v350
        %389 = vmatprep.subr.mxu0 0.0
        %390 = vmatpush1.msra.mxu0 %v351
        %391 = vmatprep.subr.mxu0 0.0
        %392 = vmatpush1.msra.mxu0 %v352
        %393 = vmatprep.subr.mxu0 0.0
        %394 = vmatpush1.msra.mxu0 %v353
        %395 = vmatprep.subr.mxu0 0.0
        %396 = vmatpush1.msra.mxu0 %v354
        %397 = vmatprep.subr.mxu0 0.0
        %398 = vmatpush1.msra.mxu0 %v355
        %399 = vmatprep.subr.mxu0 0.0
        %400 = vmatpush1.msra.mxu0 %v356
        %401 = vmatprep.subr.mxu0 0.0
        %402 = vmatpush1.msra.mxu0 %v357
        %403 = vmatprep.subr.mxu0 0.0
        %404 = vmatpush1.msra.mxu0 %v358
        %405 = vmatprep.subr.mxu0 0.0
        %406 = vmatpush1.msra.mxu0 %v359
        %407 = vmatprep.subr.mxu0 0.0
        %408 = vmatpush1.msra.mxu0 %v360
        %409 = vmatprep.subr.mxu0 0.0
        %410 = vmatpush1.msra.mxu0 %v361
        %411 = vmatprep.subr.mxu0 0.0
        %412 = vmatpush1.msra.mxu0 %v362
        %413 = vmatprep.subr.mxu0 0.0
        %414 = vmatpush1.msra.mxu0 %v363
        %415 = vmatprep.subr.mxu0 0.0
        %416 = vmatpush1.msra.mxu0 %v364
        %417 = vmatprep.subr.mxu0 0.0
        %418 = vmatpush1.msra.mxu0 %v365
        %419 = vmatprep.subr.mxu0 0.0
        %420 = vmatpush1.msra.mxu0 %v366
        %421 = vmatprep.subr.mxu0 0.0
        %422 = vmatpush1.msra.mxu0 %v367
        %423 = vmatprep.subr.mxu0 0.0
        %424 = vmatpush1.msra.mxu0 %v368
        %425 = vmatprep.subr.mxu0 0.0
        %426 = vmatpush1.msra.mxu0 %v369
        %427 = vmatprep.subr.mxu0 0.0
        %428 = vmatpush1.msra.mxu0 0.0
        %429 = vmatprep.subr.mxu0 0.0
        %430 = vmatpush1.msra.mxu0 0.0
        %431 = vmatprep.subr.mxu0 0.0
        %432 = vmatpush1.msra.mxu0 0.0
        %433 = vmatprep.subr.mxu0 0.0
        %434 = vmatpush1.msra.mxu0 0.0
        %435 = vmatprep.subr.mxu0 0.0
        %436 = vmatpush1.msra.mxu0 0.0
        %437 = vmatprep.subr.mxu0 0.0
        %438 = vmatpush1.msra.mxu0 0.0
        %439 = vmatprep.subr.mxu0 0.0
        %440 = vmatpush1.msra.mxu0 0.0
        %441 = vmatprep.mubr.f32.mxu0 %v372
        %442 = vmatmul.mubr.f32.gmra.mrb[0].mxu0 %v341
        %v443 = vpop.f32.mrb[0].mxu0
        %v444 = vadd.f32 0.0, %v443
        %v445 = vpop.f32.mrb[0].mxu0
        %446 = vmatprep.mubr.f32.mxu0 %v375
        %447 = vmatmul.mubr.f32.gmra.mrb[0].mxu0 %v343
        %v448 = vpop.f32.mrb[0].mxu0
        %v449 = vadd.f32 0.0, %v448
        %v450 = vpop.f32.mrb[0].mxu0
        %451 = vdwg.mxu0
        %v452 = vsub.f32 0.0, %v444
        %v453 = vsub.f32 0.0, %v449
        %v454 = vmul.f32 %v452, 1.442695
        %v455 = vpow.pop %v454
        %v456 = vmul.f32 %v453, 1.442695
        %v457 = vpow.pop %v456
        %v458 = vadd.f32 %v455, 1.0
        %v459 = vadd.f32 %v457, 1.0
        %v460 = vrcp.pop %v458
        %v461 = vrcp.pop %v459
        %462 = vst [vmem:[%s326] sm:$0xff] %v460
        %463 = vst [vmem:[%s326 + $0x8] sm:$0xff] %v461
        %s464 = sand.u32 %s101, 1
        %s465 = scalar_lea.sflag [#allocation4], %s464
        %s466 = sand.u32 %s101, 1
        %s467 = smul.addr %s466, 16
        %s468 = scalar_lea.vmem [#allocation3], %s467
        // Predicated region
        $region67: #{tpu_custom_call.1} parent=61 // pred_check
          %p469 = pneg %p111
        $region68: #{tpu_custom_call.1} parent=61 // pred_check_branch
          %471 = sbr.rel (%p469) target = $region70
        $region69: #{tpu_custom_call.1} parent=61 // pred_region
          %s472 = smul.u32 2, %s21
          %s474 = ssub.s32 256, 256
          %475 = vsyncadd %s465, %s474
          %s476 = smul.addr %s472, 2
          %s477 = sadd.s32 %s22, %s476
          %s478 = smul.addr %s477, 128
          %s479 = scalar_lea.hbm %s2, %s478
          %s480 = sshll.u32 %s468, 4
          %s481 = int_to_ptr.vmem [resolvable:$true] %s480
          %486 = dma.vmem_to_hbm [thread:$0]  %s481, 256, %s479, %s465, 128, 256, 8
        $region70: #{tpu_custom_call.1} parent=61 // pred_fallthru
          _
      $region62: #{tpu_custom_call.1} parent=5 // pred_fallthru
        _
      %p487 = scmp.le.s32.totalorder 2, %s11
      // Predicated region
      $region71: #{tpu_custom_call.1} parent=5 // pred_check
        %p488 = pneg %p487
      $region72: #{tpu_custom_call.1} parent=5 // pred_check_branch
        %490 = sbr.rel (%p488) target = $region74
      $region73: #{tpu_custom_call.1} parent=5 // pred_region
        %s491 = ssub.s32 %s11, 2
        // Predicated region
        $region75: #{tpu_custom_call.1} parent=73 // pred_check
          %p492 = pneg %p117
        $region76: #{tpu_custom_call.1} parent=73 // pred_check_branch
          %494 = sbr.rel (%p492) target = $region78
        $region77: #{tpu_custom_call.1} parent=73 // pred_region
          %s495 = sand.u32 %s102, 1
          %s496 = scalar_lea.sflag [#allocation4], %s495
          %s497 = sand.u32 %s102, 1
          %s498 = smul.addr %s497, 16
          %s499 = scalar_lea.vmem [#allocation3], %s498
          %500 = dma.done %s496, 256
        $region78: #{tpu_custom_call.1} parent=73 // pred_fallthru
          _
      $region74: #{tpu_custom_call.1} parent=5 // pred_fallthru
        _
    $region6: #{tpu_custom_call.1} parent=1 // loop_footer
      %s15 = sadd.s32 1, %s11
    $region7: #{tpu_custom_call.1} parent=1 // loop_footer_branch
      %10 = sbr.rel target = $region3
    $region8: #{tpu_custom_call.1} parent=1 // loop_exit
      _
    %501 = vsyncpa [#allocation4], 1
    %s502 = scalar_lea.sflag [#allocation4], 1
    %503 = vsyncpa %s502, 1

</llo_original>
